<compile_context>
chip_gen: v7x
topology: tpu7x:2x2x1
jax: 0.10.0
libtpu: 0.0.40
codegen_flags: <defaults>
</compile_context>

<pallas_src>
import jax
import jax.numpy as jnp
from jax.experimental import pallas as pl
from jax.experimental.pallas import tpu as pltpu

N_FEATS = 28 * 28   # 784
N_CODE = 64
EPS = 1e-5


def hybrid_ae_kernel(x_ref, w1q_ref, w1s_ref, b1_ref, w2t_ref, b2_ref, o_ref):
    # ---- encoder: BitLinear(784 -> 64) ----
    x = x_ref[...].astype(jnp.float32)                                      # (TB, 784)

    # Activation quantization: per-row AbsMax -> int8 range.  No clip needed:
    # |x| <= max(absmax, EPS) so x * 127 / absmax is already in [-127, 127].
    absmax = jnp.maximum(jnp.max(jnp.abs(x), axis=-1, keepdims=True), EPS)  # (TB, 1)
    x_q = jnp.round(x * (127.0 / absmax))

    # Ternary weights (pre-quantized outside the kernel).  bf16 operands are exact
    # here (integer magnitudes <= 127, ternary weights) and run the MXU at full rate
    # on v5e/v6e/v7x.
    h = jnp.dot(x_q.astype(jnp.bfloat16), w1q_ref[...],
                preferred_element_type=jnp.float32)                         # (TB, 64)

    # Dequant: h / (x_scale * w_scale) == h * (absmax * mean|W| / 127); FMA with bias.
    dq = absmax * w1s_ref[0, 0]                                             # (TB, 1)
    h = h * dq + b1_ref[...]

    # ---- decoder: Linear(64 -> 784), f32 (exactness over MXU slot savings; kernel
    # is HBM-bound so the f32 matmul is wall-clock neutral) ----
    y = jnp.dot(h, w2t_ref[...], preferred_element_type=jnp.float32)        # (TB, 784)
    o_ref[...] = (y + b2_ref[...]).astype(o_ref.dtype)


def prepare_params(w1, b1, w2, b2):
    """One-time parameter prep: quantize encoder weights, transpose, reshape biases."""
    w_mean = jnp.maximum(jnp.mean(jnp.abs(w1)), EPS)                 # global AbsMean
    w1q = jnp.clip(jnp.round(w1 * (1.0 / w_mean)), -1.0, 1.0)        # ternary {-1,0,1}
    return {
        "w1q_t": jnp.transpose(w1q).astype(jnp.bfloat16),            # (784, 64), exact in bf16
        "w1s": (w_mean / 127.0).reshape(1, 1).astype(jnp.float32),   # dequant scalar (SMEM)
        "b1": b1.reshape(1, N_CODE).astype(jnp.float32),
        "w2t": jnp.transpose(w2).astype(jnp.float32),                # (64, 784)
        "b2": b2.reshape(1, N_FEATS).astype(jnp.float32),
    }


def _round_up(v, m):
    return -(-v // m) * m


def hybrid_ae_forward(x, params, *, tb=1024, out_dtype=jnp.float32,
                      vmem_limit_bytes=None):
    """x: (B, 784) float32; params from prepare_params(). Returns (B, 784) out_dtype."""
    B = x.shape[0]

    # Tile selection: big tiles for DMA efficiency, but keep >= 4 grid steps so both
    # v7x TensorCores get >= 2 steps each and still pipeline; never exceed the
    # 8-rounded batch; always a multiple of 8 (sublane constraint).
    tb_cap = max(8, _round_up(pl.cdiv(B, 4), 8))
    tb = max(8, min(tb, tb_cap, _round_up(B, 8)))
    assert tb % 8 == 0, "batch tile must be a multiple of 8 (sublane constraint)"
    grid = (pl.cdiv(B, tb),)

    # v5e's default scoped VMEM is only 16 MiB; large tiles need an explicit limit.
    if vmem_limit_bytes is None and tb >= 512:
        vmem_limit_bytes = 64 << 20

    # Advisory cost: two (B,784)x(784,64)-sized matmuls; traffic dominated by x + out.
    out_bytes = jnp.dtype(out_dtype).itemsize
    flops = 4 * B * N_FEATS * N_CODE
    bytes_accessed = (B * N_FEATS * (4 + out_bytes)          # x in + out
                      + N_FEATS * N_CODE * (2 + 4)           # w1q bf16 + w2t f32
                      + 4 * (N_CODE + N_FEATS))              # biases

    return pl.pallas_call(
        hybrid_ae_kernel,
        out_shape=jax.ShapeDtypeStruct((B, N_FEATS), out_dtype),
        grid=grid,
        in_specs=[
            pl.BlockSpec((tb, N_FEATS), lambda i: (i, 0)),                  # x tile
            pl.BlockSpec((N_FEATS, N_CODE), lambda i: (0, 0)),              # w1q (resident)
            pl.BlockSpec(memory_space=pltpu.MemorySpace.SMEM),              # dequant scalar
            pl.BlockSpec((1, N_CODE), lambda i: (0, 0)),                    # b1 (resident)
            pl.BlockSpec((N_CODE, N_FEATS), lambda i: (0, 0)),              # w2t (resident)
            pl.BlockSpec((1, N_FEATS), lambda i: (0, 0)),                   # b2 (resident)
        ],
        out_specs=pl.BlockSpec((tb, N_FEATS), lambda i: (i, 0)),
        compiler_params=pltpu.CompilerParams(
            dimension_semantics=("parallel",),
            vmem_limit_bytes=vmem_limit_bytes,
        ),
        cost_estimate=pl.CostEstimate(
            flops=flops, transcendentals=0, bytes_accessed=bytes_accessed),
    )(x, params["w1q_t"], params["w1s"], params["b1"], params["w2t"], params["b2"])


def hybrid_ae_reference(x, w1, b1, w2, b2):
    """Pure-JAX reference of the same forward pass (for sanity checking)."""
    x = x.astype(jnp.float32)
    absmax = jnp.max(jnp.abs(x), axis=-1, keepdims=True)
    x_scale = 127.0 / jnp.maximum(absmax, EPS)
    x_q = jnp.clip(jnp.round(x * x_scale), -128.0, 127.0)
    w_scale = 1.0 / jnp.maximum(jnp.mean(jnp.abs(w1)), EPS)
    w_q = jnp.clip(jnp.round(w1 * w_scale), -1.0, 1.0)
    h = (x_q @ w_q.T) / (x_scale * w_scale) + b1
    return h @ w2.T + b2


def init_params(key):
    """Deterministic init mimicking nn.Linear's uniform(-1/sqrt(fan_in), 1/sqrt(fan_in))."""
    k1, k2, k3, k4 = jax.random.split(key, 4)
    bound1 = 1.0 / jnp.sqrt(N_FEATS)
    w1 = jax.random.uniform(k1, (N_CODE, N_FEATS), jnp.float32, -bound1, bound1)
    b1 = jax.random.uniform(k2, (N_CODE,), jnp.float32, -bound1, bound1)
    bound2 = 1.0 / jnp.sqrt(N_CODE)
    w2 = jax.random.uniform(k3, (N_FEATS, N_CODE), jnp.float32, -bound2, bound2)
    b2 = jax.random.uniform(k4, (N_FEATS,), jnp.float32, -bound2, bound2)
    return w1, b1, w2, b2


if __name__ == "__main__":
    key = jax.random.PRNGKey(0)
    k_x, k_p = jax.random.split(key)

    B = 40  # small batch; auto tile-cap -> tb=16, 3-step grid with a partial last tile
    x = jax.random.normal(k_x, (B, N_FEATS), jnp.float32)
    w1, b1, w2, b2 = init_params(k_p)
    params = prepare_params(w1, b1, w2, b2)

    out = hybrid_ae_forward(x, params)
    out = jax.block_until_ready(out)

    ref = hybrid_ae_reference(x, w1, b1, w2, b2)
    assert out.shape == (B, N_FEATS)
    assert jnp.allclose(out, ref, atol=1e-4, rtol=1e-4), "mismatch vs JAX reference"

    print("KERNEL_OK")
</pallas_src>

<mosaic_0001>
module attributes {stable_mosaic.version = 11 : i64} {
  func.func @hybrid_ae_kernel(%arg0: i32, %arg1: memref<16x784xf32, #tpu.memory_space<vmem>>, %arg2: memref<784x64xbf16, #tpu.memory_space<vmem>>, %arg3: memref<1x1xf32, #tpu.memory_space<smem>>, %arg4: memref<1x64xf32, #tpu.memory_space<vmem>>, %arg5: memref<64x784xf32, #tpu.memory_space<vmem>>, %arg6: memref<1x784xf32, #tpu.memory_space<vmem>>, %arg7: memref<16x784xf32, #tpu.memory_space<vmem>>) attributes {dimension_semantics = [#tpu.dimension_semantics<parallel>], iteration_bounds = array<i64: 3>, scalar_prefetch = 0 : i64, scratch_operands = 0 : i64, tpu.core_type = #tpu.core_type<tc>, window_params = [{transform_indices = @transform_0, window_bounds = array<i64: 16, 784>}, {pipeline_mode = #tpu.pipeline_mode<synchronous>, transform_indices = @transform_1, window_bounds = array<i64: 784, 64>}, {transform_indices = @transform_2, window_bounds = array<i64: 1, 1>}, {pipeline_mode = #tpu.pipeline_mode<synchronous>, transform_indices = @transform_3, window_bounds = array<i64: 1, 64>}, {pipeline_mode = #tpu.pipeline_mode<synchronous>, transform_indices = @transform_4, window_bounds = array<i64: 64, 784>}, {pipeline_mode = #tpu.pipeline_mode<synchronous>, transform_indices = @transform_5, window_bounds = array<i64: 1, 784>}, {transform_indices = @transform_6, window_bounds = array<i64: 16, 784>}]} {
    %c0 = arith.constant 0 : index
    %c0_0 = arith.constant 0 : index
    %0 = vector.load %arg1[%c0, %c0_0] : memref<16x784xf32, #tpu.memory_space<vmem>>, vector<16x784xf32>
    %1 = math.absf %0 : vector<16x784xf32>
    %cst = arith.constant dense<0xFF800000> : vector<16xf32>
    %2 = vector.multi_reduction <maximumf>, %1, %cst [1] : vector<16x784xf32> to vector<16xf32>
    %3 = vector.shape_cast %2 : vector<16xf32> to vector<16x1xf32>
    %cst_1 = arith.constant 9.99999974E-6 : f32
    %4 = vector.broadcast %cst_1 : f32 to vector<16x1xf32>
    %5 = arith.maximumf %3, %4 : vector<16x1xf32>
    %cst_2 = arith.constant 1.270000e+02 : f32
    %6 = vector.broadcast %cst_2 : f32 to vector<16x1xf32>
    %7 = arith.divf %6, %5 : vector<16x1xf32>
    %8 = vector.broadcast %7 : vector<16x1xf32> to vector<16x784xf32>
    %9 = arith.mulf %0, %8 : vector<16x784xf32>
    %10 = math.roundeven %9 : vector<16x784xf32>
    %11 = arith.truncf %10 : vector<16x784xf32> to vector<16x784xbf16>
    %c0_3 = arith.constant 0 : index
    %c0_4 = arith.constant 0 : index
    %12 = vector.load %arg2[%c0_3, %c0_4] : memref<784x64xbf16, #tpu.memory_space<vmem>>, vector<784x64xbf16>
    %cst_5 = arith.constant dense<0.000000e+00> : vector<16x64xf32>
    %13 = tpu.matmul %11, %12, %cst_5 {dimension_numbers = #tpu.dot_dimension_numbers<[1], [0], [0], [1], [0, 0, 1, 1], [], []>} : vector<16x784xbf16>, vector<784x64xbf16>, vector<16x64xf32> -> vector<16x64xf32>
    %c0_6 = arith.constant 0 : index
    %c0_7 = arith.constant 0 : index
    %14 = memref.load %arg3[%c0_6, %c0_7] : memref<1x1xf32, #tpu.memory_space<smem>>
    %15 = vector.broadcast %14 : f32 to vector<16x1xf32>
    %16 = arith.mulf %5, %15 : vector<16x1xf32>
    %17 = vector.broadcast %16 : vector<16x1xf32> to vector<16x64xf32>
    %18 = arith.mulf %13, %17 : vector<16x64xf32>
    %c0_8 = arith.constant 0 : index
    %c0_9 = arith.constant 0 : index
    %19 = vector.load %arg4[%c0_8, %c0_9] : memref<1x64xf32, #tpu.memory_space<vmem>>, vector<1x64xf32>
    %20 = vector.broadcast %19 : vector<1x64xf32> to vector<16x64xf32>
    %21 = arith.addf %18, %20 : vector<16x64xf32>
    %c0_10 = arith.constant 0 : index
    %c0_11 = arith.constant 0 : index
    %22 = vector.load %arg5[%c0_10, %c0_11] : memref<64x784xf32, #tpu.memory_space<vmem>>, vector<64x784xf32>
    %cst_12 = arith.constant dense<0.000000e+00> : vector<16x784xf32>
    %23 = tpu.matmul %21, %22, %cst_12 {dimension_numbers = #tpu.dot_dimension_numbers<[1], [0], [0], [1], [0, 0, 1, 1], [], []>} : vector<16x64xf32>, vector<64x784xf32>, vector<16x784xf32> -> vector<16x784xf32>
    %c0_13 = arith.constant 0 : index
    %c0_14 = arith.constant 0 : index
    %24 = vector.load %arg6[%c0_13, %c0_14] : memref<1x784xf32, #tpu.memory_space<vmem>>, vector<1x784xf32>
    %25 = vector.broadcast %24 : vector<1x784xf32> to vector<16x784xf32>
    %26 = arith.addf %23, %25 : vector<16x784xf32>
    %c0_15 = arith.constant 0 : index
    %c0_16 = arith.constant 0 : index
    %27 = vector.load %arg7[%c0_15, %c0_16] : memref<16x784xf32, #tpu.memory_space<vmem>>, vector<16x784xf32>
    tpu.vector_store %arg7[%c0_15, %c0_16], %26 {strides = array<i32>} : memref<16x784xf32, #tpu.memory_space<vmem>>, vector<16x784xf32>,
    return
  }
  func.func @transform_0(%arg0: i32) -> (i32, i32) {
    %c0_i32 = arith.constant 0 : i32
    %c0_i32_0 = arith.constant 0 : i32
    return %arg0, %c0_i32 : i32, i32
  }
  func.func @transform_1(%arg0: i32) -> (i32, i32) {
    %c0_i32 = arith.constant 0 : i32
    %c0_i32_0 = arith.constant 0 : i32
    %c0_i32_1 = arith.constant 0 : i32
    return %c0_i32, %c0_i32_0 : i32, i32
  }
  func.func @transform_2(%arg0: i32) -> (i32, i32) {
    %c0_i32 = arith.constant 0 : i32
    %c0_i32_0 = arith.constant 0 : i32
    %c0_i32_1 = arith.constant 0 : i32
    return %c0_i32, %c0_i32_0 : i32, i32
  }
  func.func @transform_3(%arg0: i32) -> (i32, i32) {
    %c0_i32 = arith.constant 0 : i32
    %c0_i32_0 = arith.constant 0 : i32
    %c0_i32_1 = arith.constant 0 : i32
    return %c0_i32, %c0_i32_0 : i32, i32
  }
  func.func @transform_4(%arg0: i32) -> (i32, i32) {
    %c0_i32 = arith.constant 0 : i32
    %c0_i32_0 = arith.constant 0 : i32
    %c0_i32_1 = arith.constant 0 : i32
    return %c0_i32, %c0_i32_0 : i32, i32
  }
  func.func @transform_5(%arg0: i32) -> (i32, i32) {
    %c0_i32 = arith.constant 0 : i32
    %c0_i32_0 = arith.constant 0 : i32
    %c0_i32_1 = arith.constant 0 : i32
    return %c0_i32, %c0_i32_0 : i32, i32
  }
  func.func @transform_6(%arg0: i32) -> (i32, i32) {
    %c0_i32 = arith.constant 0 : i32
    %c0_i32_0 = arith.constant 0 : i32
    return %arg0, %c0_i32 : i32, i32
  }
}

</mosaic_0001>

<llo_original>
// kernel: tpu_custom_call.1
$region0: #{tpu_custom_call.1}
  #allocation0 [shape = 'u32[]', space=smem, size = 0x4, offset = 0x4, fixed_abs, tag = 'smem constant byte address 0x4 - core index']
  #allocation1 [shape = 'u32[144,128]{1,0:T(1,128)}', space=vmem, size = 0x12000, scoped, tag = 'internal scratch']
  #allocation2 [shape = 'f32[1,1]{1,0:T(1,128)S(6)}', space=smem, size = 0x200, scoped, tag = 'scoped memory for tpu_custom_call.1']
  %s0 = inlined_call_operand.hbm [shape: f32[40,784], index: 0, kind: input, shape index: {}]
  %s1 = inlined_call_operand.vmem [shape: bf16[784,64], index: 1, kind: input, shape index: {}]
  %s2 = inlined_call_operand.<no memory space> [shape: f32[1,1], index: 2, kind: input, shape index: {}]
  %s3 = inlined_call_operand.vmem [shape: f32[1,64], index: 3, kind: input, shape index: {}]
  %s4 = inlined_call_operand.vmem [shape: f32[64,784], index: 4, kind: input, shape index: {}]
  %s5 = inlined_call_operand.vmem [shape: f32[1,784], index: 5, kind: input, shape index: {}]
  %s6 = inlined_call_operand.hbm [shape: f32[40,784], index: 6, kind: output, shape index: {}]
  %s7 = sld [smem:[#allocation0]]
  $region61: #{tpu_custom_call.1} parent=0
    _
  %s9 = ssub.s32 1, %s7
  %s10 = scalar_select 0, %s9, %s7
  %11 = sst [smem:[#allocation2]] %s2
  $region1: #{tpu_custom_call.1} parent=0
    #allocation3 [shape = 'u8[114688]{0}', space=vmem, size = 0x1c000, scoped, tag = 'input window, operand 0']
    #allocation4 [shape = 's32[2]{0}', space=sflag, size = 0x8, scoped, tag = 'scoped memory for tpu_custom_call.1']
    #allocation5 [shape = 's32[2]{0}', space=sflag, size = 0x8, scoped, tag = 'scoped memory for tpu_custom_call.1']
    #allocation6 [shape = 'u8[114688]{0}', space=vmem, size = 0x1c000, scoped, tag = 'output window, operand 0']
    %12 = vsyncpa [#allocation4], 0
    %s13 = scalar_lea.sflag [#allocation4], 1
    %14 = vsyncpa %s13, 0
    %15 = vsyncpa [#allocation5], 0
    %s16 = scalar_lea.sflag [#allocation5], 1
    %17 = vsyncpa %s16, 0
    loop: start=0, step=1, limit=5
    $region2: #{tpu_custom_call.1} parent=1 // loop_pre_header
      _
    $region3: #{tpu_custom_call.1} parent=1 // loop_header
      %s19 = sphi 0, %s23
      %p20 = scmp.ge.s32.totalorder %s19, 5
      %s29 = sphi 0, %s31
      %s32 = sphi 0, %s29
      %s33 = sphi 0, %s32
      %s49 = sphi 0, %s33
      %s53 = sphi 0, %s53
      %s55 = sphi 0, %s53
      %s56 = sphi 0, %s55
      %s70 = sphi 0, %s56
      %s74 = sphi 0, %s74
      %s76 = sphi 0, %s74
      %s77 = sphi 0, %s76
      %s91 = sphi 0, %s77
      %s95 = sphi 0, %s95
      %s97 = sphi 0, %s95
      %s98 = sphi 0, %s97
      %s112 = sphi 0, %s98
      %s116 = sphi 0, %s116
      %s118 = sphi 0, %s116
      %s119 = sphi 0, %s118
      %s133 = sphi 0, %s119
      %s137 = sphi 0, %s137
      %s139 = sphi 0, %s137
      %s140 = sphi 0, %s139
      %s154 = sphi 0, %s140
      %s160 = sphi 0, %s162
      %s163 = sphi 0, %s160
      %s164 = sphi 0, %s163
      %s180 = sphi 0, %s164
    $region4: #{tpu_custom_call.1} parent=1 // loop_header_branch
      %22 = sbr.rel (%p20) target = $region8
    $region5: #{tpu_custom_call.1} parent=1 // loop_body
      %s24 = ssub.s32 %s19, 1
      %s25 = ssub.s32 %s19, 2
      %s26 = sadd.s32 %s19, 1
      %s27 = ssub.s32 %s19, %s26
      %p28 = scmp.eq.s32.totalorder %s27, 0
      %s30 = sadd.s32 %s29, 1
      %s31 = scalar_select %p28, %s29, %s30
      %p34 = pneg %p28
      %p35 = scmp.eq.s32.totalorder %s19, 2
      %p36 = por %p34, %p35
      %p37 = scmp.ne.s32.totalorder %s29, %s32
      %p38 = scmp.eq.s32.totalorder %s19, 0
      %p39 = por %p37, %p38
      %p40 = scmp.ne.s32.totalorder %s29, %s32
      %p41 = scmp.eq.s32.totalorder %s24, 2
      %p42 = por %p40, %p41
      %p43 = scmp.ne.s32.totalorder %s32, %s33
      %p44 = scmp.eq.s32.totalorder %s24, 0
      %p45 = por %p43, %p44
      %p46 = scmp.ne.s32.totalorder %s32, %s33
      %p47 = scmp.eq.s32.totalorder %s25, 2
      %p48 = por %p46, %p47
      %p50 = scmp.ne.s32.totalorder %s33, %s49
      %p51 = scmp.eq.s32.totalorder %s25, 0
      %p52 = por %p50, %p51
      %s54 = sadd.s32 %s53, 1
      %p57 = scmp.eq.s32.totalorder %s19, 2
      %p58 = scmp.ne.s32.totalorder %s53, %s55
      %p59 = scmp.eq.s32.totalorder %s19, 0
      %p60 = por %p58, %p59
      %p61 = scmp.ne.s32.totalorder %s53, %s55
      %p62 = scmp.eq.s32.totalorder %s24, 2
      %p63 = por %p61, %p62
      %p64 = scmp.ne.s32.totalorder %s55, %s56
      %p65 = scmp.eq.s32.totalorder %s24, 0
      %p66 = por %p64, %p65
      %p67 = scmp.ne.s32.totalorder %s55, %s56
      %p68 = scmp.eq.s32.totalorder %s25, 2
      %p69 = por %p67, %p68
      %p71 = scmp.ne.s32.totalorder %s56, %s70
      %p72 = scmp.eq.s32.totalorder %s25, 0
      %p73 = por %p71, %p72
      %s75 = sadd.s32 %s74, 1
      %p78 = scmp.eq.s32.totalorder %s19, 2
      %p79 = scmp.ne.s32.totalorder %s74, %s76
      %p80 = scmp.eq.s32.totalorder %s19, 0
      %p81 = por %p79, %p80
      %p82 = scmp.ne.s32.totalorder %s74, %s76
      %p83 = scmp.eq.s32.totalorder %s24, 2
      %p84 = por %p82, %p83
      %p85 = scmp.ne.s32.totalorder %s76, %s77
      %p86 = scmp.eq.s32.totalorder %s24, 0
      %p87 = por %p85, %p86
      %p88 = scmp.ne.s32.totalorder %s76, %s77
      %p89 = scmp.eq.s32.totalorder %s25, 2
      %p90 = por %p88, %p89
      %p92 = scmp.ne.s32.totalorder %s77, %s91
      %p93 = scmp.eq.s32.totalorder %s25, 0
      %p94 = por %p92, %p93
      %s96 = sadd.s32 %s95, 1
      %p99 = scmp.eq.s32.totalorder %s19, 2
      %p100 = scmp.ne.s32.totalorder %s95, %s97
      %p101 = scmp.eq.s32.totalorder %s19, 0
      %p102 = por %p100, %p101
      %p103 = scmp.ne.s32.totalorder %s95, %s97
      %p104 = scmp.eq.s32.totalorder %s24, 2
      %p105 = por %p103, %p104
      %p106 = scmp.ne.s32.totalorder %s97, %s98
      %p107 = scmp.eq.s32.totalorder %s24, 0
      %p108 = por %p106, %p107
      %p109 = scmp.ne.s32.totalorder %s97, %s98
      %p110 = scmp.eq.s32.totalorder %s25, 2
      %p111 = por %p109, %p110
      %p113 = scmp.ne.s32.totalorder %s98, %s112
      %p114 = scmp.eq.s32.totalorder %s25, 0
      %p115 = por %p113, %p114
      %s117 = sadd.s32 %s116, 1
      %p120 = scmp.eq.s32.totalorder %s19, 2
      %p121 = scmp.ne.s32.totalorder %s116, %s118
      %p122 = scmp.eq.s32.totalorder %s19, 0
      %p123 = por %p121, %p122
      %p124 = scmp.ne.s32.totalorder %s116, %s118
      %p125 = scmp.eq.s32.totalorder %s24, 2
      %p126 = por %p124, %p125
      %p127 = scmp.ne.s32.totalorder %s118, %s119
      %p128 = scmp.eq.s32.totalorder %s24, 0
      %p129 = por %p127, %p128
      %p130 = scmp.ne.s32.totalorder %s118, %s119
      %p131 = scmp.eq.s32.totalorder %s25, 2
      %p132 = por %p130, %p131
      %p134 = scmp.ne.s32.totalorder %s119, %s133
      %p135 = scmp.eq.s32.totalorder %s25, 0
      %p136 = por %p134, %p135
      %s138 = sadd.s32 %s137, 1
      %p141 = scmp.eq.s32.totalorder %s19, 2
      %p142 = scmp.ne.s32.totalorder %s137, %s139
      %p143 = scmp.eq.s32.totalorder %s19, 0
      %p144 = por %p142, %p143
      %p145 = scmp.ne.s32.totalorder %s137, %s139
      %p146 = scmp.eq.s32.totalorder %s24, 2
      %p147 = por %p145, %p146
      %p148 = scmp.ne.s32.totalorder %s139, %s140
      %p149 = scmp.eq.s32.totalorder %s24, 0
      %p150 = por %p148, %p149
      %p151 = scmp.ne.s32.totalorder %s139, %s140
      %p152 = scmp.eq.s32.totalorder %s25, 2
      %p153 = por %p151, %p152
      %p155 = scmp.ne.s32.totalorder %s140, %s154
      %p156 = scmp.eq.s32.totalorder %s25, 0
      %p157 = por %p155, %p156
      %s158 = ssub.s32 %s19, %s26
      %p159 = scmp.eq.s32.totalorder %s158, 0
      %s161 = sadd.s32 %s160, 1
      %s162 = scalar_select %p159, %s160, %s161
      %p165 = pneg %p159
      %p166 = scmp.eq.s32.totalorder %s19, 2
      %p167 = por %p165, %p166
      %p168 = scmp.ne.s32.totalorder %s160, %s163
      %p169 = scmp.eq.s32.totalorder %s19, 0
      %p170 = por %p168, %p169
      %p171 = scmp.ne.s32.totalorder %s160, %s163
      %p172 = scmp.eq.s32.totalorder %s24, 2
      %p173 = por %p171, %p172
      %p174 = scmp.ne.s32.totalorder %s163, %s164
      %p175 = scmp.eq.s32.totalorder %s24, 0
      %p176 = por %p174, %p175
      %p177 = scmp.ne.s32.totalorder %s163, %s164
      %p178 = scmp.eq.s32.totalorder %s25, 2
      %p179 = por %p177, %p178
      %p181 = scmp.ne.s32.totalorder %s164, %s180
      %p182 = scmp.eq.s32.totalorder %s25, 0
      %p183 = por %p181, %p182
      %p184 = scmp.le.s32.totalorder 1, %s19
      %p185 = scmp.lt.s32.totalorder %s19, 4
      %p186 = pnand %p184, %p185
      %p187 = pneg %p186
      // Predicated region
      $region9: #{tpu_custom_call.1} parent=5 // pred_check
        _
      $region10: #{tpu_custom_call.1} parent=5 // pred_check_branch
        %189 = sbr.rel (%p186) target = $region12
      $region11: #{tpu_custom_call.1} parent=5 // pred_region
        %s190 = ssub.s32 %s19, 1
        // Predicated region
        $region13: #{tpu_custom_call.1} parent=11 // pred_check
          %p191 = pneg %p66
        $region14: #{tpu_custom_call.1} parent=11 // pred_check_branch
          %193 = sbr.rel (%p191) target = $region16
        $region15: #{tpu_custom_call.1} parent=11 // pred_region
          _
        $region16: #{tpu_custom_call.1} parent=11 // pred_fallthru
          _
        // Predicated region
        $region17: #{tpu_custom_call.1} parent=11 // pred_check
          %p194 = pneg %p87
        $region18: #{tpu_custom_call.1} parent=11 // pred_check_branch
          %196 = sbr.rel (%p194) target = $region20
        $region19: #{tpu_custom_call.1} parent=11 // pred_region
          _
        $region20: #{tpu_custom_call.1} parent=11 // pred_fallthru
          _
        // Predicated region
        $region21: #{tpu_custom_call.1} parent=11 // pred_check
          %p197 = pneg %p108
        $region22: #{tpu_custom_call.1} parent=11 // pred_check_branch
          %199 = sbr.rel (%p197) target = $region24
        $region23: #{tpu_custom_call.1} parent=11 // pred_region
          _
        $region24: #{tpu_custom_call.1} parent=11 // pred_fallthru
          _
        // Predicated region
        $region25: #{tpu_custom_call.1} parent=11 // pred_check
          %p200 = pneg %p129
        $region26: #{tpu_custom_call.1} parent=11 // pred_check_branch
          %202 = sbr.rel (%p200) target = $region28
        $region27: #{tpu_custom_call.1} parent=11 // pred_region
          _
        $region28: #{tpu_custom_call.1} parent=11 // pred_fallthru
          _
        // Predicated region
        $region29: #{tpu_custom_call.1} parent=11 // pred_check
          %p203 = pneg %p150
        $region30: #{tpu_custom_call.1} parent=11 // pred_check_branch
          %205 = sbr.rel (%p203) target = $region32
        $region31: #{tpu_custom_call.1} parent=11 // pred_region
          _
        $region32: #{tpu_custom_call.1} parent=11 // pred_fallthru
          _
      $region12: #{tpu_custom_call.1} parent=5 // pred_fallthru
        _
      %p206 = scmp.lt.s32.totalorder %s19, 3
      // Predicated region
      $region33: #{tpu_custom_call.1} parent=5 // pred_check
        %p207 = pneg %p206
      $region34: #{tpu_custom_call.1} parent=5 // pred_check_branch
        %209 = sbr.rel (%p207) target = $region36
      $region35: #{tpu_custom_call.1} parent=5 // pred_region
        // Predicated region
        $region37: #{tpu_custom_call.1} parent=35 // pred_check
          %p210 = pneg %p39
        $region38: #{tpu_custom_call.1} parent=35 // pred_check_branch
          %212 = sbr.rel (%p210) target = $region40
        $region39: #{tpu_custom_call.1} parent=35 // pred_region
          %s213 = sand.u32 %s29, 1
          %s214 = scalar_lea.sflag [#allocation4], %s213
          %s215 = sand.u32 %s29, 1
          %s216 = smul.addr %s215, 112
          %s217 = scalar_lea.vmem [#allocation3], %s216
          %s218 = smul.u32 2, %s19
          %s219 = ssub.s32 5, %s218
          %p220 = scmp.lt.s32.totalorder %s219, 2
          %s221 = scalar_select %p220, %s219, 2
          %s222 = smul.u32 128, %s221
          %s223 = smul.u32 %s222, 7
          %s225 = ssub.s32 1792, %s223
          %226 = vsyncadd %s214, %s225
          %p227 = scmp.ne.s32.totalorder 0, %s223
          %s228 = smul.addr %s218, 7
          %s229 = smul.addr %s228, 128
          %s230 = scalar_lea.hbm %s0, %s229
          %s231 = smul.u32 56, %s221
          %s232 = sshll.u32 %s217, 4
          %s233 = int_to_ptr.vmem [resolvable:$true] %s232
          %s234 = sshll.u32 %s231, 4
          %238 = dma.hbm_to_vmem [thread:$0]  (%p227), %s230, %s234, %s233, %s214, 896, 896, 56
        $region40: #{tpu_custom_call.1} parent=35 // pred_fallthru
          _
      $region36: #{tpu_custom_call.1} parent=5 // pred_fallthru
        _
      %p239 = scmp.le.s32.totalorder 1, %s19
      %p240 = scmp.lt.s32.totalorder %s19, 4
      %p241 = pnand %p239, %p240
      %p242 = pneg %p241
      // Predicated region
      $region41: #{tpu_custom_call.1} parent=5 // pred_check
        _
      $region42: #{tpu_custom_call.1} parent=5 // pred_check_branch
        %244 = sbr.rel (%p241) target = $region44
      $region43: #{tpu_custom_call.1} parent=5 // pred_region
        %s245 = ssub.s32 %s19, 1
        %s246 = sand.u32 %s32, 1
        %s247 = scalar_lea.sflag [#allocation4], %s246
        %s248 = sand.u32 %s32, 1
        %s249 = smul.addr %s248, 112
        %s250 = scalar_lea.vmem [#allocation3], %s249
        // Predicated region
        $region45: #{tpu_custom_call.1} parent=43 // pred_check
          %p251 = pneg %p45
        $region46: #{tpu_custom_call.1} parent=43 // pred_check_branch
          %253 = sbr.rel (%p251) target = $region48
        $region47: #{tpu_custom_call.1} parent=43 // pred_region
          %254 = dma.done %s247, 1792
        $region48: #{tpu_custom_call.1} parent=43 // pred_fallthru
          _
        %s255 = sand.u32 %s32, 1
        %s256 = scalar_lea.sflag [#allocation4], %s255
        %s257 = sand.u32 %s32, 1
        %s258 = smul.addr %s257, 112
        %s259 = scalar_lea.vmem [#allocation3], %s258
        %p260 = pneg %p45
        %p261 = pneg %p42
        %p262 = pneg %p66
        %p263 = pneg %p63
        %p264 = pneg %p87
        %p265 = pneg %p84
        %p266 = pneg %p108
        %p267 = pneg %p105
        %p268 = pneg %p129
        %p269 = pneg %p126
        %p270 = pneg %p150
        %p271 = pneg %p147
        %p272 = pneg %p176
        %p273 = pneg %p173
        %s274 = sand.u32 %s163, 1
        %s275 = scalar_lea.sflag [#allocation5], %s274
        %s276 = sand.u32 %s163, 1
        %s277 = smul.addr %s276, 112
        %s278 = scalar_lea.vmem [#allocation6], %s277
        %s279 = smul.u32 2, %s24
        %s280 = ssub.s32 5, %s279
        %p281 = scmp.lt.s32.totalorder %s280, 2
        %s282 = scalar_select %p281, %s280, 2
        %s283 = smul.u32 128, %s282
        %s284 = smul.u32 %s283, 7
        %s285 = smul.u32 2, %s24
        %s286 = ssub.s32 5, %s285
        %p287 = scmp.lt.s32.totalorder %s286, 2
        %s288 = scalar_select %p287, %s286, 2
        %s289 = smul.u32 128, %s288
        %s290 = smul.u32 %s289, 7
        %v292 = vld [vmem:[%s250] sm:$0xff]
        %v293 = vld [vmem:[%s250 + $0x8] sm:$0xff]
        %v294 = vld [vmem:[%s250 + $0x10] sm:$0xff]
        %v295 = vld [vmem:[%s250 + $0x18] sm:$0xff]
        %v296 = vld [vmem:[%s250 + $0x20] sm:$0xff]
        %v297 = vld [vmem:[%s250 + $0x28] sm:$0xff]
        %v298 = vld [vmem:[%s250 + $0x30] sm:$0xff]
        %v299 = vld [vmem:[%s250 + $0x38] sm:$0xff]
        %v300 = vld [vmem:[%s250 + $0x40] sm:$0xff]
        %v301 = vld [vmem:[%s250 + $0x48] sm:$0xff]
        %v302 = vld [vmem:[%s250 + $0x50] sm:$0xff]
        %v303 = vld [vmem:[%s250 + $0x58] sm:$0xff]
        %v304 = vld [vmem:[%s250 + $0x60] sm:$0xff]
        %v305 = vld [vmem:[%s250 + $0x68] sm:$0xff]
        %v306 = vand.u32 2147483647, %v292
        %v307 = vand.u32 2147483647, %v293
        %v308 = vand.u32 2147483647, %v294
        %v309 = vand.u32 2147483647, %v295
        %v310 = vand.u32 2147483647, %v296
        %v311 = vand.u32 2147483647, %v297
        %v312 = vand.u32 2147483647, %v298
        %v313 = vand.u32 2147483647, %v299
        %v314 = vand.u32 2147483647, %v300
        %v315 = vand.u32 2147483647, %v301
        %v316 = vand.u32 2147483647, %v302
        %v317 = vand.u32 2147483647, %v303
        %v318 = vand.u32 2147483647, %v304
        %v319 = vand.u32 2147483647, %v305
        %v320 = vmax.f32 %v306, %v308
        %v321 = vmax.f32 %v307, %v309
        %v322 = vmax.f32 %v320, %v310
        %v323 = vmax.f32 %v321, %v311
        %vm324 = vcmask 130048
        %v325 = vsel %vm324, %v312, -inf
        %v326 = vmax.f32 %v322, %v325
        %v327 = vmax.f32 %v326, %v323
        %328 = vmax.xlane.f32.xlu0 %v327
        %v329 = vpop.xlane.xlu0 %328
        %v330 = vmax.f32 %v313, %v315
        %v331 = vmax.f32 %v314, %v316
        %v332 = vmax.f32 %v330, %v317
        %v333 = vmax.f32 %v331, %v318
        %v334 = vsel %vm324, %v319, -inf
        %v335 = vmax.f32 %v332, %v334
        %v336 = vmax.f32 %v335, %v333
        %337 = vmax.xlane.f32.xlu0 %v336
        %v338 = vpop.xlane.xlu0 %337
        %v339 = vmax.f32 %v329, 1e-05
        %v340 = vmax.f32 %v338, 1e-05
        %v341 = vrcp.pop %v339
        %v342 = vmul.f32 127.0, %v341
        %v343 = vrcp.pop %v340
        %v344 = vmul.f32 127.0, %v343
        %v345 = vmul.f32 %v292, %v342
        %v346 = vmul.f32 %v293, %v342
        %v347 = vmul.f32 %v294, %v342
        %v348 = vmul.f32 %v295, %v342
        %v349 = vmul.f32 %v296, %v342
        %v350 = vmul.f32 %v297, %v342
        %v351 = vmul.f32 %v298, %v342
        %v352 = vmul.f32 %v299, %v344
        %v353 = vmul.f32 %v300, %v344
        %v354 = vmul.f32 %v301, %v344
        %v355 = vmul.f32 %v302, %v344
        %v356 = vmul.f32 %v303, %v344
        %v357 = vmul.f32 %v304, %v344
        %v358 = vmul.f32 %v305, %v344
        %v359 = vround.ne.pseudo %v345
        %v360 = vround.ne.pseudo %v346
        %v361 = vround.ne.pseudo %v347
        %v362 = vround.ne.pseudo %v348
        %v363 = vround.ne.pseudo %v349
        %v364 = vround.ne.pseudo %v350
        %v365 = vround.ne.pseudo %v351
        %v366 = vround.ne.pseudo %v352
        %v367 = vround.ne.pseudo %v353
        %v368 = vround.ne.pseudo %v354
        %v369 = vround.ne.pseudo %v355
        %v370 = vround.ne.pseudo %v356
        %v371 = vround.ne.pseudo %v357
        %v372 = vround.ne.pseudo %v358
        %v373 = vpack.c.bf16 %v366, %v359
        %v374 = vpack.c.bf16 %v367, %v360
        %v375 = vpack.c.bf16 %v368, %v361
        %v376 = vpack.c.bf16 %v369, %v362
        %v377 = vpack.c.bf16 %v370, %v363
        %v378 = vpack.c.bf16 %v371, %v364
        %v379 = vpack.c.bf16 %v372, %v365
        %v380 = vld [vmem:[%s1] sm:$0xf]
        %v381 = vld [vmem:[%s1 + $0x4] sm:$0xf]
        %v382 = vld [vmem:[%s1 + $0x8] sm:$0xf]
        %v383 = vld [vmem:[%s1 + $0xc] sm:$0xf]
        %v384 = vld [vmem:[%s1 + $0x10] sm:$0xf]
        %v385 = vld [vmem:[%s1 + $0x14] sm:$0xf]
        %v386 = vld [vmem:[%s1 + $0x18] sm:$0xf]
        %v387 = vld [vmem:[%s1 + $0x1c] sm:$0xf]
        %v388 = vld [vmem:[%s1 + $0x20] sm:$0xf]
        %v389 = vld [vmem:[%s1 + $0x24] sm:$0xf]
        %v390 = vld [vmem:[%s1 + $0x28] sm:$0xf]
        %v391 = vld [vmem:[%s1 + $0x2c] sm:$0xf]
        %v392 = vld [vmem:[%s1 + $0x30] sm:$0xf]
        %v393 = vld [vmem:[%s1 + $0x34] sm:$0xf]
        %v394 = vld [vmem:[%s1 + $0x38] sm:$0xf]
        %v395 = vld [vmem:[%s1 + $0x3c] sm:$0xf]
        %v396 = vld [vmem:[%s1 + $0x40] sm:$0xf]
        %v397 = vld [vmem:[%s1 + $0x44] sm:$0xf]
        %v398 = vld [vmem:[%s1 + $0x48] sm:$0xf]
        %v399 = vld [vmem:[%s1 + $0x4c] sm:$0xf]
        %v400 = vld [vmem:[%s1 + $0x50] sm:$0xf]
        %v401 = vld [vmem:[%s1 + $0x54] sm:$0xf]
        %v402 = vld [vmem:[%s1 + $0x58] sm:$0xf]
        %v403 = vld [vmem:[%s1 + $0x5c] sm:$0xf]
        %v404 = vld [vmem:[%s1 + $0x60] sm:$0xf]
        %v405 = vld [vmem:[%s1 + $0x64] sm:$0xf]
        %v406 = vld [vmem:[%s1 + $0x68] sm:$0xf]
        %v407 = vld [vmem:[%s1 + $0x6c] sm:$0xf]
        %v408 = vld [vmem:[%s1 + $0x70] sm:$0xf]
        %v409 = vld [vmem:[%s1 + $0x74] sm:$0xf]
        %v410 = vld [vmem:[%s1 + $0x78] sm:$0xf]
        %v411 = vld [vmem:[%s1 + $0x7c] sm:$0xf]
        %v412 = vld [vmem:[%s1 + $0x80] sm:$0xf]
        %v413 = vld [vmem:[%s1 + $0x84] sm:$0xf]
        %v414 = vld [vmem:[%s1 + $0x88] sm:$0xf]
        %v415 = vld [vmem:[%s1 + $0x8c] sm:$0xf]
        %v416 = vld [vmem:[%s1 + $0x90] sm:$0xf]
        %v417 = vld [vmem:[%s1 + $0x94] sm:$0xf]
        %v418 = vld [vmem:[%s1 + $0x98] sm:$0xf]
        %v419 = vld [vmem:[%s1 + $0x9c] sm:$0xf]
        %v420 = vld [vmem:[%s1 + $0xa0] sm:$0xf]
        %v421 = vld [vmem:[%s1 + $0xa4] sm:$0xf]
        %v422 = vld [vmem:[%s1 + $0xa8] sm:$0xf]
        %v423 = vld [vmem:[%s1 + $0xac] sm:$0xf]
        %v424 = vld [vmem:[%s1 + $0xb0] sm:$0xf]
        %v425 = vld [vmem:[%s1 + $0xb4] sm:$0xf]
        %v426 = vld [vmem:[%s1 + $0xb8] sm:$0xf]
        %v427 = vld [vmem:[%s1 + $0xbc] sm:$0xf]
        %v428 = vld [vmem:[%s1 + $0xc0] sm:$0xf]
        %v429 = vld [vmem:[%s1 + $0xc4] sm:$0xf]
        %v430 = vld [vmem:[%s1 + $0xc8] sm:$0xf]
        %v431 = vld [vmem:[%s1 + $0xcc] sm:$0xf]
        %v432 = vld [vmem:[%s1 + $0xd0] sm:$0xf]
        %v433 = vld [vmem:[%s1 + $0xd4] sm:$0xf]
        %v434 = vld [vmem:[%s1 + $0xd8] sm:$0xf]
        %v435 = vld [vmem:[%s1 + $0xdc] sm:$0xf]
        %v436 = vld [vmem:[%s1 + $0xe0] sm:$0xf]
        %v437 = vld [vmem:[%s1 + $0xe4] sm:$0xf]
        %v438 = vld [vmem:[%s1 + $0xe8] sm:$0xf]
        %v439 = vld [vmem:[%s1 + $0xec] sm:$0xf]
        %v440 = vld [vmem:[%s1 + $0xf0] sm:$0xf]
        %v441 = vld [vmem:[%s1 + $0xf4] sm:$0xf]
        %v442 = vld [vmem:[%s1 + $0xf8] sm:$0xf]
        %v443 = vld [vmem:[%s1 + $0xfc] sm:$0xf]
        %v444 = vld [vmem:[%s1 + $0x100] sm:$0xf]
        %v445 = vld [vmem:[%s1 + $0x104] sm:$0xf]
        %v446 = vld [vmem:[%s1 + $0x108] sm:$0xf]
        %v447 = vld [vmem:[%s1 + $0x10c] sm:$0xf]
        %v448 = vld [vmem:[%s1 + $0x110] sm:$0xf]
        %v449 = vld [vmem:[%s1 + $0x114] sm:$0xf]
        %v450 = vld [vmem:[%s1 + $0x118] sm:$0xf]
        %v451 = vld [vmem:[%s1 + $0x11c] sm:$0xf]
        %v452 = vld [vmem:[%s1 + $0x120] sm:$0xf]
        %v453 = vld [vmem:[%s1 + $0x124] sm:$0xf]
        %v454 = vld [vmem:[%s1 + $0x128] sm:$0xf]
        %v455 = vld [vmem:[%s1 + $0x12c] sm:$0xf]
        %v456 = vld [vmem:[%s1 + $0x130] sm:$0xf]
        %v457 = vld [vmem:[%s1 + $0x134] sm:$0xf]
        %v458 = vld [vmem:[%s1 + $0x138] sm:$0xf]
        %v459 = vld [vmem:[%s1 + $0x13c] sm:$0xf]
        %v460 = vld [vmem:[%s1 + $0x140] sm:$0xf]
        %v461 = vld [vmem:[%s1 + $0x144] sm:$0xf]
        %v462 = vld [vmem:[%s1 + $0x148] sm:$0xf]
        %v463 = vld [vmem:[%s1 + $0x14c] sm:$0xf]
        %v464 = vld [vmem:[%s1 + $0x150] sm:$0xf]
        %v465 = vld [vmem:[%s1 + $0x154] sm:$0xf]
        %v466 = vld [vmem:[%s1 + $0x158] sm:$0xf]
        %v467 = vld [vmem:[%s1 + $0x15c] sm:$0xf]
        %v468 = vld [vmem:[%s1 + $0x160] sm:$0xf]
        %v469 = vld [vmem:[%s1 + $0x164] sm:$0xf]
        %v470 = vld [vmem:[%s1 + $0x168] sm:$0xf]
        %v471 = vld [vmem:[%s1 + $0x16c] sm:$0xf]
        %v472 = vld [vmem:[%s1 + $0x170] sm:$0xf]
        %v473 = vld [vmem:[%s1 + $0x174] sm:$0xf]
        %v474 = vld [vmem:[%s1 + $0x178] sm:$0xf]
        %v475 = vld [vmem:[%s1 + $0x17c] sm:$0xf]
        %v476 = vld [vmem:[%s1 + $0x180] sm:$0xf]
        %v477 = vld [vmem:[%s1 + $0x184] sm:$0xf]
        %v576 = vunpack.c.l.b16 %v380
        %v577 = vunpack.c.l.b16 %v381
        %v578 = vunpack.c.l.b16 %v382
        %v579 = vunpack.c.l.b16 %v383
        %v580 = vunpack.c.l.b16 %v384
        %v581 = vunpack.c.l.b16 %v385
        %v582 = vunpack.c.l.b16 %v386
        %v583 = vunpack.c.l.b16 %v387
        %v584 = vunpack.c.l.b16 %v388
        %v585 = vunpack.c.l.b16 %v389
        %v586 = vunpack.c.l.b16 %v390
        %v587 = vunpack.c.l.b16 %v391
        %v588 = vunpack.c.l.b16 %v392
        %v589 = vunpack.c.l.b16 %v393
        %v590 = vunpack.c.l.b16 %v394
        %v591 = vunpack.c.l.b16 %v395
        %v592 = vunpack.c.l.b16 %v396
        %v593 = vunpack.c.l.b16 %v397
        %v594 = vunpack.c.l.b16 %v398
        %v595 = vunpack.c.l.b16 %v399
        %v596 = vunpack.c.l.b16 %v400
        %v597 = vunpack.c.l.b16 %v401
        %v598 = vunpack.c.l.b16 %v402
        %v599 = vunpack.c.l.b16 %v403
        %v600 = vunpack.c.l.b16 %v404
        %v601 = vunpack.c.l.b16 %v405
        %v602 = vunpack.c.l.b16 %v406
        %v603 = vunpack.c.l.b16 %v407
        %v604 = vunpack.c.l.b16 %v408
        %v605 = vunpack.c.l.b16 %v409
        %v606 = vunpack.c.l.b16 %v410
        %v607 = vunpack.c.l.b16 %v411
        %v608 = vunpack.c.l.b16 %v412
        %v609 = vunpack.c.l.b16 %v413
        %v610 = vunpack.c.l.b16 %v414
        %v611 = vunpack.c.l.b16 %v415
        %v612 = vunpack.c.l.b16 %v416
        %v613 = vunpack.c.l.b16 %v417
        %v614 = vunpack.c.l.b16 %v418
        %v615 = vunpack.c.l.b16 %v419
        %v616 = vunpack.c.l.b16 %v420
        %v617 = vunpack.c.l.b16 %v421
        %v618 = vunpack.c.l.b16 %v422
        %v619 = vunpack.c.l.b16 %v423
        %v620 = vunpack.c.l.b16 %v424
        %v621 = vunpack.c.l.b16 %v425
        %v622 = vunpack.c.l.b16 %v426
        %v623 = vunpack.c.l.b16 %v427
        %v624 = vunpack.c.l.b16 %v428
        %v625 = vunpack.c.l.b16 %v429
        %v626 = vunpack.c.l.b16 %v430
        %v627 = vunpack.c.l.b16 %v431
        %v628 = vunpack.c.l.b16 %v432
        %v629 = vunpack.c.l.b16 %v433
        %v630 = vunpack.c.l.b16 %v434
        %v631 = vunpack.c.l.b16 %v435
        %v632 = vunpack.c.l.b16 %v436
        %v633 = vunpack.c.l.b16 %v437
        %v634 = vunpack.c.l.b16 %v438
        %v635 = vunpack.c.l.b16 %v439
        %v636 = vunpack.c.l.b16 %v440
        %v637 = vunpack.c.l.b16 %v441
        %v638 = vunpack.c.l.b16 %v442
        %v639 = vunpack.c.l.b16 %v443
        %v640 = vunpack.c.l.b16 %v444
        %v641 = vunpack.c.l.b16 %v445
        %v642 = vunpack.c.l.b16 %v446
        %v643 = vunpack.c.l.b16 %v447
        %v644 = vunpack.c.l.b16 %v448
        %v645 = vunpack.c.l.b16 %v449
        %v646 = vunpack.c.l.b16 %v450
        %v647 = vunpack.c.l.b16 %v451
        %v648 = vunpack.c.l.b16 %v452
        %v649 = vunpack.c.l.b16 %v453
        %v650 = vunpack.c.l.b16 %v454
        %v651 = vunpack.c.l.b16 %v455
        %v652 = vunpack.c.l.b16 %v456
        %v653 = vunpack.c.l.b16 %v457
        %v654 = vunpack.c.l.b16 %v458
        %v655 = vunpack.c.l.b16 %v459
        %v656 = vunpack.c.l.b16 %v460
        %v657 = vunpack.c.l.b16 %v461
        %v658 = vunpack.c.l.b16 %v462
        %v659 = vunpack.c.l.b16 %v463
        %v660 = vunpack.c.l.b16 %v464
        %v661 = vunpack.c.l.b16 %v465
        %v662 = vunpack.c.l.b16 %v466
        %v663 = vunpack.c.l.b16 %v467
        %v664 = vunpack.c.l.b16 %v468
        %v665 = vunpack.c.l.b16 %v469
        %v666 = vunpack.c.l.b16 %v470
        %v667 = vunpack.c.l.b16 %v471
        %v668 = vunpack.c.l.b16 %v472
        %v669 = vunpack.c.l.b16 %v473
        %v670 = vunpack.c.l.b16 %v474
        %v671 = vunpack.c.l.b16 %v475
        %v672 = vunpack.c.l.b16 %v476
        %v673 = vunpack.c.l.b16 %v477
        %v674 = vpack.c.b16 %v577, %v576
        %v675 = vpack.c.b16 %v579, %v578
        %v676 = vpack.c.b16 %v581, %v580
        %v677 = vpack.c.b16 %v583, %v582
        %v678 = vpack.c.b16 %v585, %v584
        %v679 = vpack.c.b16 %v587, %v586
        %v680 = vpack.c.b16 %v589, %v588
        %v681 = vpack.c.b16 %v591, %v590
        %v682 = vpack.c.b16 %v593, %v592
        %v683 = vpack.c.b16 %v595, %v594
        %v684 = vpack.c.b16 %v597, %v596
        %v685 = vpack.c.b16 %v599, %v598
        %v686 = vpack.c.b16 %v601, %v600
        %v687 = vpack.c.b16 %v603, %v602
        %v688 = vpack.c.b16 %v605, %v604
        %v689 = vpack.c.b16 %v607, %v606
        %v690 = vpack.c.b16 %v609, %v608
        %v691 = vpack.c.b16 %v611, %v610
        %v692 = vpack.c.b16 %v613, %v612
        %v693 = vpack.c.b16 %v615, %v614
        %v694 = vpack.c.b16 %v617, %v616
        %v695 = vpack.c.b16 %v619, %v618
        %v696 = vpack.c.b16 %v621, %v620
        %v697 = vpack.c.b16 %v623, %v622
        %v698 = vpack.c.b16 %v625, %v624
        %v699 = vpack.c.b16 %v627, %v626
        %v700 = vpack.c.b16 %v629, %v628
        %v701 = vpack.c.b16 %v631, %v630
        %v702 = vpack.c.b16 %v633, %v632
        %v703 = vpack.c.b16 %v635, %v634
        %v704 = vpack.c.b16 %v637, %v636
        %v705 = vpack.c.b16 %v639, %v638
        %v706 = vpack.c.b16 %v641, %v640
        %v707 = vpack.c.b16 %v643, %v642
        %v708 = vpack.c.b16 %v645, %v644
        %v709 = vpack.c.b16 %v647, %v646
        %v710 = vpack.c.b16 %v649, %v648
        %v711 = vpack.c.b16 %v651, %v650
        %v712 = vpack.c.b16 %v653, %v652
        %v713 = vpack.c.b16 %v655, %v654
        %v714 = vpack.c.b16 %v657, %v656
        %v715 = vpack.c.b16 %v659, %v658
        %v716 = vpack.c.b16 %v661, %v660
        %v717 = vpack.c.b16 %v663, %v662
        %v718 = vpack.c.b16 %v665, %v664
        %v719 = vpack.c.b16 %v667, %v666
        %v720 = vpack.c.b16 %v669, %v668
        %v721 = vpack.c.b16 %v671, %v670
        %v722 = vpack.c.b16 %v673, %v672
        %v773 = vsel %vm324, %v379, 0
        %775 = vmatprep.subr.bf16.mxu0 0
        %776 = vmatpush1.bf16.msra.mxu0 %v674
        %777 = vmatprep.subr.bf16.mxu0 0
        %778 = vmatpush1.bf16.msra.mxu0 %v675
        %779 = vmatprep.subr.bf16.mxu0 0
        %780 = vmatpush1.bf16.msra.mxu0 %v676
        %781 = vmatprep.subr.bf16.mxu0 0
        %782 = vmatpush1.bf16.msra.mxu0 %v677
        %783 = vmatprep.subr.bf16.mxu0 0
        %784 = vmatpush1.bf16.msra.mxu0 %v678
        %785 = vmatprep.subr.bf16.mxu0 0
        %786 = vmatpush1.bf16.msra.mxu0 %v679
        %787 = vmatprep.subr.bf16.mxu0 0
        %788 = vmatpush1.bf16.msra.mxu0 %v680
        %789 = vmatprep.subr.bf16.mxu0 0
        %790 = vmatpush1.bf16.msra.mxu0 %v681
        %791 = vmatprep.subr.bf16.mxu0 0
        %792 = vmatpush1.bf16.msra.mxu0 %v682
        %793 = vmatprep.subr.bf16.mxu0 0
        %794 = vmatpush1.bf16.msra.mxu0 %v683
        %795 = vmatprep.subr.bf16.mxu0 0
        %796 = vmatpush1.bf16.msra.mxu0 %v684
        %797 = vmatprep.subr.bf16.mxu0 0
        %798 = vmatpush1.bf16.msra.mxu0 %v685
        %799 = vmatprep.subr.bf16.mxu0 0
        %800 = vmatpush1.bf16.msra.mxu0 %v686
        %801 = vmatprep.subr.bf16.mxu0 0
        %802 = vmatpush1.bf16.msra.mxu0 %v687
        %803 = vmatprep.subr.bf16.mxu0 0
        %804 = vmatpush1.bf16.msra.mxu0 %v688
        %805 = vmatprep.subr.bf16.mxu0 0
        %806 = vmatpush1.bf16.msra.mxu0 %v689
        %807 = vmatprep.mubr.bf16.mxu0 %v374
        %808 = vmatmul.mubr.bf16.gmra.mrb[0].mxu0 %v373
        %v809 = vpop.f32.mrb[0].mxu0
        %v810 = vadd.f32 0.0, %v809
        %v811 = vpop.f32.mrb[0].mxu0
        %v812 = vpop.f32.mrb[0].mxu0
        %v813 = vadd.f32 0.0, %v812
        %v814 = vpop.f32.mrb[0].mxu0
        %815 = vdwg.mxu0
        %816 = vmatprep.subr.bf16.mxu0 0
        %817 = vmatpush1.bf16.msra.mxu0 %v690
        %818 = vmatprep.subr.bf16.mxu0 0
        %819 = vmatpush1.bf16.msra.mxu0 %v691
        %820 = vmatprep.subr.bf16.mxu0 0
        %821 = vmatpush1.bf16.msra.mxu0 %v692
        %822 = vmatprep.subr.bf16.mxu0 0
        %823 = vmatpush1.bf16.msra.mxu0 %v693
        %824 = vmatprep.subr.bf16.mxu0 0
        %825 = vmatpush1.bf16.msra.mxu0 %v694
        %826 = vmatprep.subr.bf16.mxu0 0
        %827 = vmatpush1.bf16.msra.mxu0 %v695
        %828 = vmatprep.subr.bf16.mxu0 0
        %829 = vmatpush1.bf16.msra.mxu0 %v696
        %830 = vmatprep.subr.bf16.mxu0 0
        %831 = vmatpush1.bf16.msra.mxu0 %v697
        %832 = vmatprep.subr.bf16.mxu0 0
        %833 = vmatpush1.bf16.msra.mxu0 %v698
        %834 = vmatprep.subr.bf16.mxu0 0
        %835 = vmatpush1.bf16.msra.mxu0 %v699
        %836 = vmatprep.subr.bf16.mxu0 0
        %837 = vmatpush1.bf16.msra.mxu0 %v700
        %838 = vmatprep.subr.bf16.mxu0 0
        %839 = vmatpush1.bf16.msra.mxu0 %v701
        %840 = vmatprep.subr.bf16.mxu0 0
        %841 = vmatpush1.bf16.msra.mxu0 %v702
        %842 = vmatprep.subr.bf16.mxu0 0
        %843 = vmatpush1.bf16.msra.mxu0 %v703
        %844 = vmatprep.subr.bf16.mxu0 0
        %845 = vmatpush1.bf16.msra.mxu0 %v704
        %846 = vmatprep.subr.bf16.mxu0 0
        %847 = vmatpush1.bf16.msra.mxu0 %v705
        %848 = vmatprep.mubr.bf16.mxu0 %v376
        %849 = vmatmul.mubr.bf16.gmra.mrb[0].mxu0 %v375
        %v850 = vpop.f32.mrb[0].mxu0
        %v851 = vadd.f32 %v810, %v850
        %v852 = vpop.f32.mrb[0].mxu0
        %v853 = vpop.f32.mrb[0].mxu0
        %v854 = vadd.f32 %v813, %v853
        %v855 = vpop.f32.mrb[0].mxu0
        %856 = vdwg.mxu0
        %857 = vmatprep.subr.bf16.mxu0 0
        %858 = vmatpush1.bf16.msra.mxu0 %v706
        %859 = vmatprep.subr.bf16.mxu0 0
        %860 = vmatpush1.bf16.msra.mxu0 %v707
        %861 = vmatprep.subr.bf16.mxu0 0
        %862 = vmatpush1.bf16.msra.mxu0 %v708
        %863 = vmatprep.subr.bf16.mxu0 0
        %864 = vmatpush1.bf16.msra.mxu0 %v709
        %865 = vmatprep.subr.bf16.mxu0 0
        %866 = vmatpush1.bf16.msra.mxu0 %v710
        %867 = vmatprep.subr.bf16.mxu0 0
        %868 = vmatpush1.bf16.msra.mxu0 %v711
        %869 = vmatprep.subr.bf16.mxu0 0
        %870 = vmatpush1.bf16.msra.mxu0 %v712
        %871 = vmatprep.subr.bf16.mxu0 0
        %872 = vmatpush1.bf16.msra.mxu0 %v713
        %873 = vmatprep.subr.bf16.mxu0 0
        %874 = vmatpush1.bf16.msra.mxu0 %v714
        %875 = vmatprep.subr.bf16.mxu0 0
        %876 = vmatpush1.bf16.msra.mxu0 %v715
        %877 = vmatprep.subr.bf16.mxu0 0
        %878 = vmatpush1.bf16.msra.mxu0 %v716
        %879 = vmatprep.subr.bf16.mxu0 0
        %880 = vmatpush1.bf16.msra.mxu0 %v717
        %881 = vmatprep.subr.bf16.mxu0 0
        %882 = vmatpush1.bf16.msra.mxu0 %v718
        %883 = vmatprep.subr.bf16.mxu0 0
        %884 = vmatpush1.bf16.msra.mxu0 %v719
        %885 = vmatprep.subr.bf16.mxu0 0
        %886 = vmatpush1.bf16.msra.mxu0 %v720
        %887 = vmatprep.subr.bf16.mxu0 0
        %888 = vmatpush1.bf16.msra.mxu0 %v721
        %889 = vmatprep.mubr.bf16.mxu0 %v378
        %890 = vmatmul.mubr.bf16.gmra.mrb[0].mxu0 %v377
        %v891 = vpop.f32.mrb[0].mxu0
        %v892 = vadd.f32 %v851, %v891
        %v893 = vpop.f32.mrb[0].mxu0
        %v894 = vpop.f32.mrb[0].mxu0
        %v895 = vadd.f32 %v854, %v894
        %v896 = vpop.f32.mrb[0].mxu0
        %897 = vdwg.mxu0
        %898 = vmatprep.subr.bf16.mxu0 0
        %899 = vmatpush1.bf16.msra.mxu0 %v722
        %900 = vmatprep.subr.bf16.mxu0 0
        %901 = vmatpush1.bf16.msra.mxu0 0
        %902 = vmatprep.subr.bf16.mxu0 0
        %903 = vmatpush1.bf16.msra.mxu0 0
        %904 = vmatprep.subr.bf16.mxu0 0
        %905 = vmatpush1.bf16.msra.mxu0 0
        %906 = vmatprep.subr.bf16.mxu0 0
        %907 = vmatpush1.bf16.msra.mxu0 0
        %908 = vmatprep.subr.bf16.mxu0 0
        %909 = vmatpush1.bf16.msra.mxu0 0
        %910 = vmatprep.subr.bf16.mxu0 0
        %911 = vmatpush1.bf16.msra.mxu0 0
        %912 = vmatprep.subr.bf16.mxu0 0
        %913 = vmatpush1.bf16.msra.mxu0 0
        %914 = vmatprep.subr.bf16.mxu0 0
        %915 = vmatpush1.bf16.msra.mxu0 0
        %916 = vmatprep.subr.bf16.mxu0 0
        %917 = vmatpush1.bf16.msra.mxu0 0
        %918 = vmatprep.subr.bf16.mxu0 0
        %919 = vmatpush1.bf16.msra.mxu0 0
        %920 = vmatprep.subr.bf16.mxu0 0
        %921 = vmatpush1.bf16.msra.mxu0 0
        %922 = vmatprep.subr.bf16.mxu0 0
        %923 = vmatpush1.bf16.msra.mxu0 0
        %924 = vmatprep.subr.bf16.mxu0 0
        %925 = vmatpush1.bf16.msra.mxu0 0
        %926 = vmatprep.subr.bf16.mxu0 0
        %927 = vmatpush1.bf16.msra.mxu0 0
        %928 = vmatprep.subr.bf16.mxu0 0
        %929 = vmatpush1.bf16.msra.mxu0 0
        %930 = vmatprep.mubr.bf16.mxu0 0
        %931 = vmatmul.mubr.bf16.gmra.mrb[0].mxu0 %v773
        %v932 = vpop.f32.mrb[0].mxu0
        %v933 = vadd.f32 %v892, %v932
        %v934 = vpop.f32.mrb[0].mxu0
        %v935 = vpop.f32.mrb[0].mxu0
        %v936 = vadd.f32 %v895, %v935
        %v937 = vpop.f32.mrb[0].mxu0
        %938 = vdwg.mxu0
        %s939 = sld [smem:[#allocation2]]
        %v940 = vstv %s939
        %v941 = vmul.f32 %v339, %v940
        %v942 = vmul.f32 %v340, %v940
        %v943 = vmul.f32 %v933, %v941
        %v944 = vmul.f32 %v936, %v942
        %v945 = vld [vmem:[%s3] sm:$0x1]
        %v947 = vlaneseq
        %v948 = vshrl.u32 %v947, 7
        %v949 = vsub.s32 0, %v948
        %v950 = vrot.slane %v945, %v949
        %v952 = vadd.f32 %v943, %v950
        %v953 = vadd.f32 %v944, %v950
        %v954 = vld [vmem:[%s4] sm:$0xff]
        %v955 = vld [vmem:[%s4 + $0x8] sm:$0xff]
        %v956 = vld [vmem:[%s4 + $0x10] sm:$0xff]
        %v957 = vld [vmem:[%s4 + $0x18] sm:$0xff]
        %v958 = vld [vmem:[%s4 + $0x20] sm:$0xff]
        %v959 = vld [vmem:[%s4 + $0x28] sm:$0xff]
        %v960 = vld [vmem:[%s4 + $0x30] sm:$0xff]
        %v961 = vld [vmem:[%s4 + $0x38] sm:$0xff]
        %v962 = vld [vmem:[%s4 + $0x40] sm:$0xff]
        %v963 = vld [vmem:[%s4 + $0x48] sm:$0xff]
        %v964 = vld [vmem:[%s4 + $0x50] sm:$0xff]
        %v965 = vld [vmem:[%s4 + $0x58] sm:$0xff]
        %v966 = vld [vmem:[%s4 + $0x60] sm:$0xff]
        %v967 = vld [vmem:[%s4 + $0x68] sm:$0xff]
        %v968 = vld [vmem:[%s4 + $0x70] sm:$0xff]
        %v969 = vld [vmem:[%s4 + $0x78] sm:$0xff]
        %v970 = vld [vmem:[%s4 + $0x80] sm:$0xff]
        %v971 = vld [vmem:[%s4 + $0x88] sm:$0xff]
        %v972 = vld [vmem:[%s4 + $0x90] sm:$0xff]
        %v973 = vld [vmem:[%s4 + $0x98] sm:$0xff]
        %v974 = vld [vmem:[%s4 + $0xa0] sm:$0xff]
        %v975 = vld [vmem:[%s4 + $0xa8] sm:$0xff]
        %v976 = vld [vmem:[%s4 + $0xb0] sm:$0xff]
        %v977 = vld [vmem:[%s4 + $0xb8] sm:$0xff]
        %v978 = vld [vmem:[%s4 + $0xc0] sm:$0xff]
        %v979 = vld [vmem:[%s4 + $0xc8] sm:$0xff]
        %v980 = vld [vmem:[%s4 + $0xd0] sm:$0xff]
        %v981 = vld [vmem:[%s4 + $0xd8] sm:$0xff]
        %v982 = vld [vmem:[%s4 + $0xe0] sm:$0xff]
        %v983 = vld [vmem:[%s4 + $0xe8] sm:$0xff]
        %v984 = vld [vmem:[%s4 + $0xf0] sm:$0xff]
        %v985 = vld [vmem:[%s4 + $0xf8] sm:$0xff]
        %v986 = vld [vmem:[%s4 + $0x100] sm:$0xff]
        %v987 = vld [vmem:[%s4 + $0x108] sm:$0xff]
        %v988 = vld [vmem:[%s4 + $0x110] sm:$0xff]
        %v989 = vld [vmem:[%s4 + $0x118] sm:$0xff]
        %v990 = vld [vmem:[%s4 + $0x120] sm:$0xff]
        %v991 = vld [vmem:[%s4 + $0x128] sm:$0xff]
        %v992 = vld [vmem:[%s4 + $0x130] sm:$0xff]
        %v993 = vld [vmem:[%s4 + $0x138] sm:$0xff]
        %v994 = vld [vmem:[%s4 + $0x140] sm:$0xff]
        %v995 = vld [vmem:[%s4 + $0x148] sm:$0xff]
        %v996 = vld [vmem:[%s4 + $0x150] sm:$0xff]
        %v997 = vld [vmem:[%s4 + $0x158] sm:$0xff]
        %v998 = vld [vmem:[%s4 + $0x160] sm:$0xff]
        %v999 = vld [vmem:[%s4 + $0x168] sm:$0xff]
        %v1000 = vld [vmem:[%s4 + $0x170] sm:$0xff]
        %v1001 = vld [vmem:[%s4 + $0x178] sm:$0xff]
        %v1002 = vld [vmem:[%s4 + $0x180] sm:$0xff]
        %v1003 = vld [vmem:[%s4 + $0x188] sm:$0xff]
        %v1004 = vld [vmem:[%s4 + $0x190] sm:$0xff]
        %v1005 = vld [vmem:[%s4 + $0x198] sm:$0xff]
        %v1006 = vld [vmem:[%s4 + $0x1a0] sm:$0xff]
        %v1007 = vld [vmem:[%s4 + $0x1a8] sm:$0xff]
        %v1008 = vld [vmem:[%s4 + $0x1b0] sm:$0xff]
        %v1009 = vld [vmem:[%s4 + $0x1b8] sm:$0xff]
        %v1010 = vld [vmem:[%s5] sm:$0x7f]
        %v1012 = vlaneseq
        %v1013 = vshrl.u32 %v1012, 7
        %v1014 = vsub.s32 0, %v1013
        %v1015 = vrot.slane %v1010, %v1014
        %v1016 = vlaneseq
        %v1017 = vshrl.u32 %v1016, 7
        %v1018 = vsub.s32 1, %v1017
        %v1019 = vrot.slane %v1010, %v1018
        %v1020 = vlaneseq
        %v1021 = vshrl.u32 %v1020, 7
        %v1022 = vsub.s32 2, %v1021
        %v1023 = vrot.slane %v1010, %v1022
        %v1024 = vlaneseq
        %v1025 = vshrl.u32 %v1024, 7
        %v1026 = vsub.s32 3, %v1025
        %v1027 = vrot.slane %v1010, %v1026
        %v1028 = vlaneseq
        %v1029 = vshrl.u32 %v1028, 7
        %v1030 = vsub.s32 4, %v1029
        %v1031 = vrot.slane %v1010, %v1030
        %v1032 = vlaneseq
        %v1033 = vshrl.u32 %v1032, 7
        %v1034 = vsub.s32 5, %v1033
        %v1035 = vrot.slane %v1010, %v1034
        %v1036 = vlaneseq
        %v1037 = vshrl.u32 %v1036, 7
        %v1038 = vsub.s32 6, %v1037
        %v1039 = vrot.slane %v1010, %v1038
        %vm1047 = vcmask 523264
        %v1049 = vsel %vm1047, %v952, 0
        %v1052 = vsel %vm1047, %v953, 0
        %1054 = vmatprep.subr.mxu0 %v955
        %1055 = vmatpush1.msra.mxu0 %v954
        %1056 = vmatprep.subr.mxu0 %v962
        %1057 = vmatpush1.msra.mxu0 %v961
        %1058 = vmatprep.subr.mxu0 %v969
        %1059 = vmatpush1.msra.mxu0 %v968
        %1060 = vmatprep.subr.mxu0 %v976
        %1061 = vmatpush1.msra.mxu0 %v975
        %1062 = vmatprep.subr.mxu0 %v983
        %1063 = vmatpush1.msra.mxu0 %v982
        %1064 = vmatprep.subr.mxu0 %v990
        %1065 = vmatpush1.msra.mxu0 %v989
        %1066 = vmatprep.subr.mxu0 %v997
        %1067 = vmatpush1.msra.mxu0 %v996
        %1068 = vmatprep.subr.mxu0 %v1004
        %1069 = vmatpush1.msra.mxu0 %v1003
        %1070 = vmatprep.subr.mxu0 0.0
        %1071 = vmatpush1.msra.mxu0 0.0
        %1072 = vmatprep.subr.mxu0 0.0
        %1073 = vmatpush1.msra.mxu0 0.0
        %1074 = vmatprep.subr.mxu0 0.0
        %1075 = vmatpush1.msra.mxu0 0.0
        %1076 = vmatprep.subr.mxu0 0.0
        %1077 = vmatpush1.msra.mxu0 0.0
        %1078 = vmatprep.subr.mxu0 0.0
        %1079 = vmatpush1.msra.mxu0 0.0
        %1080 = vmatprep.subr.mxu0 0.0
        %1081 = vmatpush1.msra.mxu0 0.0
        %1082 = vmatprep.subr.mxu0 0.0
        %1083 = vmatpush1.msra.mxu0 0.0
        %1084 = vmatprep.subr.mxu0 0.0
        %1085 = vmatpush1.msra.mxu0 0.0
        %1086 = vmatprep.subr.mxu0 0.0
        %1087 = vmatpush1.msra.mxu0 0.0
        %1088 = vmatprep.subr.mxu0 0.0
        %1089 = vmatpush1.msra.mxu0 0.0
        %1090 = vmatprep.subr.mxu0 0.0
        %1091 = vmatpush1.msra.mxu0 0.0
        %1092 = vmatprep.subr.mxu0 0.0
        %1093 = vmatpush1.msra.mxu0 0.0
        %1094 = vmatprep.subr.mxu0 0.0
        %1095 = vmatpush1.msra.mxu0 0.0
        %1096 = vmatprep.subr.mxu0 0.0
        %1097 = vmatpush1.msra.mxu0 0.0
        %1098 = vmatprep.subr.mxu0 0.0
        %1099 = vmatpush1.msra.mxu0 0.0
        %1100 = vmatprep.subr.mxu0 0.0
        %1101 = vmatpush1.msra.mxu0 0.0
        %1102 = vmatprep.subr.mxu0 0.0
        %1103 = vmatpush1.msra.mxu0 0.0
        %1104 = vmatprep.subr.mxu0 0.0
        %1105 = vmatpush1.msra.mxu0 0.0
        %1106 = vmatprep.subr.mxu0 0.0
        %1107 = vmatpush1.msra.mxu0 0.0
        %1108 = vmatprep.subr.mxu0 0.0
        %1109 = vmatpush1.msra.mxu0 0.0
        %1110 = vmatprep.subr.mxu0 0.0
        %1111 = vmatpush1.msra.mxu0 0.0
        %1112 = vmatprep.subr.mxu0 0.0
        %1113 = vmatpush1.msra.mxu0 0.0
        %1114 = vmatprep.subr.mxu0 0.0
        %1115 = vmatpush1.msra.mxu0 0.0
        %1116 = vmatprep.subr.mxu0 0.0
        %1117 = vmatpush1.msra.mxu0 0.0
        %1118 = vmatprep.mubr.f32.mxu0 0.0
        %1119 = vmatmul.mubr.f32.gmra.mrb[0].mxu0 %v1049
        %v1120 = vpop.f32.mrb[0].mxu0
        %v1121 = vadd.f32 %v1015, %v1120
        %v1122 = vpop.f32.mrb[0].mxu0
        %v1123 = vadd.f32 %v1019, %v1122
        %1124 = vmatprep.mubr.f32.mxu0 0.0
        %1125 = vmatmul.mubr.f32.gmra.mrb[0].mxu0 %v1052
        %v1126 = vpop.f32.mrb[0].mxu0
        %v1127 = vadd.f32 %v1015, %v1126
        %v1128 = vpop.f32.mrb[0].mxu0
        %v1129 = vadd.f32 %v1019, %v1128
        %1130 = vdwg.mxu0
        %1131 = vmatprep.subr.mxu0 %v957
        %1132 = vmatpush1.msra.mxu0 %v956
        %1133 = vmatprep.subr.mxu0 %v964
        %1134 = vmatpush1.msra.mxu0 %v963
        %1135 = vmatprep.subr.mxu0 %v971
        %1136 = vmatpush1.msra.mxu0 %v970
        %1137 = vmatprep.subr.mxu0 %v978
        %1138 = vmatpush1.msra.mxu0 %v977
        %1139 = vmatprep.subr.mxu0 %v985
        %1140 = vmatpush1.msra.mxu0 %v984
        %1141 = vmatprep.subr.mxu0 %v992
        %1142 = vmatpush1.msra.mxu0 %v991
        %1143 = vmatprep.subr.mxu0 %v999
        %1144 = vmatpush1.msra.mxu0 %v998
        %1145 = vmatprep.subr.mxu0 %v1006
        %1146 = vmatpush1.msra.mxu0 %v1005
        %1147 = vmatprep.subr.mxu0 0.0
        %1148 = vmatpush1.msra.mxu0 0.0
        %1149 = vmatprep.subr.mxu0 0.0
        %1150 = vmatpush1.msra.mxu0 0.0
        %1151 = vmatprep.subr.mxu0 0.0
        %1152 = vmatpush1.msra.mxu0 0.0
        %1153 = vmatprep.subr.mxu0 0.0
        %1154 = vmatpush1.msra.mxu0 0.0
        %1155 = vmatprep.subr.mxu0 0.0
        %1156 = vmatpush1.msra.mxu0 0.0
        %1157 = vmatprep.subr.mxu0 0.0
        %1158 = vmatpush1.msra.mxu0 0.0
        %1159 = vmatprep.subr.mxu0 0.0
        %1160 = vmatpush1.msra.mxu0 0.0
        %1161 = vmatprep.subr.mxu0 0.0
        %1162 = vmatpush1.msra.mxu0 0.0
        %1163 = vmatprep.subr.mxu0 0.0
        %1164 = vmatpush1.msra.mxu0 0.0
        %1165 = vmatprep.subr.mxu0 0.0
        %1166 = vmatpush1.msra.mxu0 0.0
        %1167 = vmatprep.subr.mxu0 0.0
        %1168 = vmatpush1.msra.mxu0 0.0
        %1169 = vmatprep.subr.mxu0 0.0
        %1170 = vmatpush1.msra.mxu0 0.0
        %1171 = vmatprep.subr.mxu0 0.0
        %1172 = vmatpush1.msra.mxu0 0.0
        %1173 = vmatprep.subr.mxu0 0.0
        %1174 = vmatpush1.msra.mxu0 0.0
        %1175 = vmatprep.subr.mxu0 0.0
        %1176 = vmatpush1.msra.mxu0 0.0
        %1177 = vmatprep.subr.mxu0 0.0
        %1178 = vmatpush1.msra.mxu0 0.0
        %1179 = vmatprep.subr.mxu0 0.0
        %1180 = vmatpush1.msra.mxu0 0.0
        %1181 = vmatprep.subr.mxu0 0.0
        %1182 = vmatpush1.msra.mxu0 0.0
        %1183 = vmatprep.subr.mxu0 0.0
        %1184 = vmatpush1.msra.mxu0 0.0
        %1185 = vmatprep.subr.mxu0 0.0
        %1186 = vmatpush1.msra.mxu0 0.0
        %1187 = vmatprep.subr.mxu0 0.0
        %1188 = vmatpush1.msra.mxu0 0.0
        %1189 = vmatprep.subr.mxu0 0.0
        %1190 = vmatpush1.msra.mxu0 0.0
        %1191 = vmatprep.subr.mxu0 0.0
        %1192 = vmatpush1.msra.mxu0 0.0
        %1193 = vmatprep.subr.mxu0 0.0
        %1194 = vmatpush1.msra.mxu0 0.0
        %1195 = vmatprep.mubr.f32.mxu0 0.0
        %1196 = vmatmul.mubr.f32.gmra.mrb[0].mxu0 %v1049
        %v1197 = vpop.f32.mrb[0].mxu0
        %v1198 = vadd.f32 %v1023, %v1197
        %v1199 = vpop.f32.mrb[0].mxu0
        %v1200 = vadd.f32 %v1027, %v1199
        %1201 = vmatprep.mubr.f32.mxu0 0.0
        %1202 = vmatmul.mubr.f32.gmra.mrb[0].mxu0 %v1052
        %v1203 = vpop.f32.mrb[0].mxu0
        %v1204 = vadd.f32 %v1023, %v1203
        %v1205 = vpop.f32.mrb[0].mxu0
        %v1206 = vadd.f32 %v1027, %v1205
        %1207 = vdwg.mxu0
        %1208 = vmatprep.subr.mxu0 %v959
        %1209 = vmatpush1.msra.mxu0 %v958
        %1210 = vmatprep.subr.mxu0 %v966
        %1211 = vmatpush1.msra.mxu0 %v965
        %1212 = vmatprep.subr.mxu0 %v973
        %1213 = vmatpush1.msra.mxu0 %v972
        %1214 = vmatprep.subr.mxu0 %v980
        %1215 = vmatpush1.msra.mxu0 %v979
        %1216 = vmatprep.subr.mxu0 %v987
        %1217 = vmatpush1.msra.mxu0 %v986
        %1218 = vmatprep.subr.mxu0 %v994
        %1219 = vmatpush1.msra.mxu0 %v993
        %1220 = vmatprep.subr.mxu0 %v1001
        %1221 = vmatpush1.msra.mxu0 %v1000
        %1222 = vmatprep.subr.mxu0 %v1008
        %1223 = vmatpush1.msra.mxu0 %v1007
        %1224 = vmatprep.subr.mxu0 0.0
        %1225 = vmatpush1.msra.mxu0 0.0
        %1226 = vmatprep.subr.mxu0 0.0
        %1227 = vmatpush1.msra.mxu0 0.0
        %1228 = vmatprep.subr.mxu0 0.0
        %1229 = vmatpush1.msra.mxu0 0.0
        %1230 = vmatprep.subr.mxu0 0.0
        %1231 = vmatpush1.msra.mxu0 0.0
        %1232 = vmatprep.subr.mxu0 0.0
        %1233 = vmatpush1.msra.mxu0 0.0
        %1234 = vmatprep.subr.mxu0 0.0
        %1235 = vmatpush1.msra.mxu0 0.0
        %1236 = vmatprep.subr.mxu0 0.0
        %1237 = vmatpush1.msra.mxu0 0.0
        %1238 = vmatprep.subr.mxu0 0.0
        %1239 = vmatpush1.msra.mxu0 0.0
        %1240 = vmatprep.subr.mxu0 0.0
        %1241 = vmatpush1.msra.mxu0 0.0
        %1242 = vmatprep.subr.mxu0 0.0
        %1243 = vmatpush1.msra.mxu0 0.0
        %1244 = vmatprep.subr.mxu0 0.0
        %1245 = vmatpush1.msra.mxu0 0.0
        %1246 = vmatprep.subr.mxu0 0.0
        %1247 = vmatpush1.msra.mxu0 0.0
        %1248 = vmatprep.subr.mxu0 0.0
        %1249 = vmatpush1.msra.mxu0 0.0
        %1250 = vmatprep.subr.mxu0 0.0
        %1251 = vmatpush1.msra.mxu0 0.0
        %1252 = vmatprep.subr.mxu0 0.0
        %1253 = vmatpush1.msra.mxu0 0.0
        %1254 = vmatprep.subr.mxu0 0.0
        %1255 = vmatpush1.msra.mxu0 0.0
        %1256 = vmatprep.subr.mxu0 0.0
        %1257 = vmatpush1.msra.mxu0 0.0
        %1258 = vmatprep.subr.mxu0 0.0
        %1259 = vmatpush1.msra.mxu0 0.0
        %1260 = vmatprep.subr.mxu0 0.0
        %1261 = vmatpush1.msra.mxu0 0.0
        %1262 = vmatprep.subr.mxu0 0.0
        %1263 = vmatpush1.msra.mxu0 0.0
        %1264 = vmatprep.subr.mxu0 0.0
        %1265 = vmatpush1.msra.mxu0 0.0
        %1266 = vmatprep.subr.mxu0 0.0
        %1267 = vmatpush1.msra.mxu0 0.0
        %1268 = vmatprep.subr.mxu0 0.0
        %1269 = vmatpush1.msra.mxu0 0.0
        %1270 = vmatprep.subr.mxu0 0.0
        %1271 = vmatpush1.msra.mxu0 0.0
        %1272 = vmatprep.mubr.f32.mxu0 0.0
        %1273 = vmatmul.mubr.f32.gmra.mrb[0].mxu0 %v1049
        %v1274 = vpop.f32.mrb[0].mxu0
        %v1275 = vadd.f32 %v1031, %v1274
        %v1276 = vpop.f32.mrb[0].mxu0
        %v1277 = vadd.f32 %v1035, %v1276
        %1278 = vmatprep.mubr.f32.mxu0 0.0
        %1279 = vmatmul.mubr.f32.gmra.mrb[0].mxu0 %v1052
        %v1280 = vpop.f32.mrb[0].mxu0
        %v1281 = vadd.f32 %v1031, %v1280
        %v1282 = vpop.f32.mrb[0].mxu0
        %v1283 = vadd.f32 %v1035, %v1282
        %1284 = vdwg.mxu0
        %1285 = vmatprep.subr.mxu0 0.0
        %1286 = vmatpush1.msra.mxu0 %v960
        %1287 = vmatprep.subr.mxu0 0.0
        %1288 = vmatpush1.msra.mxu0 %v967
        %1289 = vmatprep.subr.mxu0 0.0
        %1290 = vmatpush1.msra.mxu0 %v974
        %1291 = vmatprep.subr.mxu0 0.0
        %1292 = vmatpush1.msra.mxu0 %v981
        %1293 = vmatprep.subr.mxu0 0.0
        %1294 = vmatpush1.msra.mxu0 %v988
        %1295 = vmatprep.subr.mxu0 0.0
        %1296 = vmatpush1.msra.mxu0 %v995
        %1297 = vmatprep.subr.mxu0 0.0
        %1298 = vmatpush1.msra.mxu0 %v1002
        %1299 = vmatprep.subr.mxu0 0.0
        %1300 = vmatpush1.msra.mxu0 %v1009
        %1301 = vmatprep.subr.mxu0 0.0
        %1302 = vmatpush1.msra.mxu0 0.0
        %1303 = vmatprep.subr.mxu0 0.0
        %1304 = vmatpush1.msra.mxu0 0.0
        %1305 = vmatprep.subr.mxu0 0.0
        %1306 = vmatpush1.msra.mxu0 0.0
        %1307 = vmatprep.subr.mxu0 0.0
        %1308 = vmatpush1.msra.mxu0 0.0
        %1309 = vmatprep.subr.mxu0 0.0
        %1310 = vmatpush1.msra.mxu0 0.0
        %1311 = vmatprep.subr.mxu0 0.0
        %1312 = vmatpush1.msra.mxu0 0.0
        %1313 = vmatprep.subr.mxu0 0.0
        %1314 = vmatpush1.msra.mxu0 0.0
        %1315 = vmatprep.subr.mxu0 0.0
        %1316 = vmatpush1.msra.mxu0 0.0
        %1317 = vmatprep.subr.mxu0 0.0
        %1318 = vmatpush1.msra.mxu0 0.0
        %1319 = vmatprep.subr.mxu0 0.0
        %1320 = vmatpush1.msra.mxu0 0.0
        %1321 = vmatprep.subr.mxu0 0.0
        %1322 = vmatpush1.msra.mxu0 0.0
        %1323 = vmatprep.subr.mxu0 0.0
        %1324 = vmatpush1.msra.mxu0 0.0
        %1325 = vmatprep.subr.mxu0 0.0
        %1326 = vmatpush1.msra.mxu0 0.0
        %1327 = vmatprep.subr.mxu0 0.0
        %1328 = vmatpush1.msra.mxu0 0.0
        %1329 = vmatprep.subr.mxu0 0.0
        %1330 = vmatpush1.msra.mxu0 0.0
        %1331 = vmatprep.subr.mxu0 0.0
        %1332 = vmatpush1.msra.mxu0 0.0
        %1333 = vmatprep.subr.mxu0 0.0
        %1334 = vmatpush1.msra.mxu0 0.0
        %1335 = vmatprep.subr.mxu0 0.0
        %1336 = vmatpush1.msra.mxu0 0.0
        %1337 = vmatprep.subr.mxu0 0.0
        %1338 = vmatpush1.msra.mxu0 0.0
        %1339 = vmatprep.subr.mxu0 0.0
        %1340 = vmatpush1.msra.mxu0 0.0
        %1341 = vmatprep.subr.mxu0 0.0
        %1342 = vmatpush1.msra.mxu0 0.0
        %1343 = vmatprep.subr.mxu0 0.0
        %1344 = vmatpush1.msra.mxu0 0.0
        %1345 = vmatprep.subr.mxu0 0.0
        %1346 = vmatpush1.msra.mxu0 0.0
        %1347 = vmatprep.subr.mxu0 0.0
        %1348 = vmatpush1.msra.mxu0 0.0
        %1349 = vmatprep.mubr.f32.mxu0 0.0
        %1350 = vmatmul.mubr.f32.gmra.mrb[0].mxu0 %v1049
        %v1351 = vpop.f32.mrb[0].mxu0
        %v1352 = vadd.f32 %v1039, %v1351
        %v1353 = vpop.f32.mrb[0].mxu0
        %1354 = vmatprep.mubr.f32.mxu0 0.0
        %1355 = vmatmul.mubr.f32.gmra.mrb[0].mxu0 %v1052
        %v1356 = vpop.f32.mrb[0].mxu0
        %v1357 = vadd.f32 %v1039, %v1356
        %v1358 = vpop.f32.mrb[0].mxu0
        %1359 = vdwg.mxu0
        %1360 = vst [vmem:[%s278] sm:$0xff] %v1121
        %1361 = vst [vmem:[%s278 + $0x8] sm:$0xff] %v1123
        %1362 = vst [vmem:[%s278 + $0x10] sm:$0xff] %v1198
        %1363 = vst [vmem:[%s278 + $0x18] sm:$0xff] %v1200
        %1364 = vst [vmem:[%s278 + $0x20] sm:$0xff] %v1275
        %1365 = vst [vmem:[%s278 + $0x28] sm:$0xff] %v1277
        %1366 = vst.msk [vmem:[%s278 + $0x30] sm:$0xff] %vm324, %v1352
        %1367 = vst [vmem:[%s278 + $0x38] sm:$0xff] %v1127
        %1368 = vst [vmem:[%s278 + $0x40] sm:$0xff] %v1129
        %1369 = vst [vmem:[%s278 + $0x48] sm:$0xff] %v1204
        %1370 = vst [vmem:[%s278 + $0x50] sm:$0xff] %v1206
        %1371 = vst [vmem:[%s278 + $0x58] sm:$0xff] %v1281
        %1372 = vst [vmem:[%s278 + $0x60] sm:$0xff] %v1283
        %1373 = vst.msk [vmem:[%s278 + $0x68] sm:$0xff] %vm324, %v1357
        %s1374 = sand.u32 %s163, 1
        %s1375 = scalar_lea.sflag [#allocation5], %s1374
        %s1376 = sand.u32 %s163, 1
        %s1377 = smul.addr %s1376, 112
        %s1378 = scalar_lea.vmem [#allocation6], %s1377
        // Predicated region
        $region49: #{tpu_custom_call.1} parent=43 // pred_check
          %p1379 = pneg %p173
        $region50: #{tpu_custom_call.1} parent=43 // pred_check_branch
          %1381 = sbr.rel (%p1379) target = $region52
        $region51: #{tpu_custom_call.1} parent=43 // pred_region
          %s1382 = smul.u32 2, %s24
          %s1383 = ssub.s32 5, %s1382
          %p1384 = scmp.lt.s32.totalorder %s1383, 2
          %s1385 = scalar_select %p1384, %s1383, 2
          %s1386 = smul.u32 128, %s1385
          %s1387 = smul.u32 %s1386, 7
          %s1389 = ssub.s32 1792, %s1387
          %1390 = vsyncadd %s1375, %s1389
          %p1391 = scmp.ne.s32.totalorder 0, %s1387
          %s1392 = smul.addr %s1382, 7
          %s1393 = smul.addr %s1392, 128
          %s1394 = scalar_lea.hbm %s6, %s1393
          %s1395 = smul.u32 56, %s1385
          %s1396 = sshll.u32 %s1378, 4
          %s1397 = int_to_ptr.vmem [resolvable:$true] %s1396
          %s1398 = sshll.u32 %s1395, 4
          %1402 = dma.vmem_to_hbm [thread:$0]  (%p1391), %s1397, %s1398, %s1394, %s1375, 896, 896, 56
        $region52: #{tpu_custom_call.1} parent=43 // pred_fallthru
          _
      $region44: #{tpu_custom_call.1} parent=5 // pred_fallthru
        _
      %p1403 = scmp.le.s32.totalorder 2, %s19
      // Predicated region
      $region53: #{tpu_custom_call.1} parent=5 // pred_check
        %p1404 = pneg %p1403
      $region54: #{tpu_custom_call.1} parent=5 // pred_check_branch
        %1406 = sbr.rel (%p1404) target = $region56
      $region55: #{tpu_custom_call.1} parent=5 // pred_region
        %s1407 = ssub.s32 %s19, 2
        // Predicated region
        $region57: #{tpu_custom_call.1} parent=55 // pred_check
          %p1408 = pneg %p179
        $region58: #{tpu_custom_call.1} parent=55 // pred_check_branch
          %1410 = sbr.rel (%p1408) target = $region60
        $region59: #{tpu_custom_call.1} parent=55 // pred_region
          %s1411 = sand.u32 %s164, 1
          %s1412 = scalar_lea.sflag [#allocation5], %s1411
          %s1413 = sand.u32 %s164, 1
          %s1414 = smul.addr %s1413, 112
          %s1415 = scalar_lea.vmem [#allocation6], %s1414
          %1416 = dma.done %s1412, 1792
        $region60: #{tpu_custom_call.1} parent=55 // pred_fallthru
          _
      $region56: #{tpu_custom_call.1} parent=5 // pred_fallthru
        _
    $region6: #{tpu_custom_call.1} parent=1 // loop_footer
      %s23 = sadd.s32 1, %s19
    $region7: #{tpu_custom_call.1} parent=1 // loop_footer_branch
      %18 = sbr.rel target = $region3
    $region8: #{tpu_custom_call.1} parent=1 // loop_exit
      _
    %1417 = vsyncpa [#allocation4], 1
    %s1418 = scalar_lea.sflag [#allocation4], 1
    %1419 = vsyncpa %s1418, 1
    %1420 = vsyncpa [#allocation5], 1
    %s1421 = scalar_lea.sflag [#allocation5], 1
    %1422 = vsyncpa %s1421, 1

</llo_original>
